<compile_context>
chip_gen: v5e
topology: v5e:2x2
jax: 0.10.0
libtpu: 0.0.40
codegen_flags: <defaults>
</compile_context>

<pallas_src>
import functools

import jax
import jax.numpy as jnp
from jax.experimental import pallas as pl
from jax.experimental.pallas import tpu as pltpu

_LANES = 128
_TARGET_BLOCK_BYTES = 4 * 1024 * 1024      # ~4 MiB per block (in or out)
_VMEM_LIMIT_BYTES = 32 * 1024 * 1024       # covers 2x(in)+2x(out) with 2x headroom


def _sublane_multiple(dtype) -> int:
    # Native sublane tile: 8 rows for 4-byte, 16 for 2-byte, 32 for 1-byte.
    itemsize = jnp.dtype(dtype).itemsize
    return max(8, 32 // max(itemsize, 1))


def _num_tensorcores() -> int:
    # Only v7x has 2 TensorCores per chip; everything else is single-TC.
    try:
        kind = jax.devices()[0].device_kind.lower()
        if "v7" in kind:
            return 2
    except Exception:
        pass
    return 1


def _lambda_kernel(x_ref, o_ref, *, scale):
    # Lambda body: fn(x, *args) == relu(x * scale).  Pure VPU elementwise work.
    x = x_ref[...]
    s = jnp.asarray(scale, dtype=x.dtype)
    zero = jnp.asarray(0, dtype=x.dtype)
    o_ref[...] = jnp.maximum(x * s, zero)


def pallas_lambda(x, scale):
    """Apply Lambda(fn=relu(x*scale)) elementwise via a Pallas TPU kernel.

    x: any-shape float array (e.g. NCHW).  Returns same shape/dtype.
    """
    orig_shape = x.shape
    dtype = x.dtype
    n = x.size
    itemsize = jnp.dtype(dtype).itemsize
    sublane = _sublane_multiple(dtype)

    # Flatten to a lane-dense (rows, 128) slab.
    rows = pl.cdiv(n, _LANES)
    pad = rows * _LANES - n  # < 128 elems; zero for 128-divisible sizes (common case)

    x_flat = jnp.ravel(x)
    if pad:
        # TODO(synk): odd sizes pay one extra pad/slice pass; 128-divisible sizes skip it.
        x_flat = jnp.pad(x_flat, (0, pad))
    x2d = x_flat.reshape(rows, _LANES)

    # dtype-scaled max tile rows targeting ~4 MiB blocks, sublane-aligned.
    max_tile_rows = max(
        sublane, (_TARGET_BLOCK_BYTES // (_LANES * itemsize)) // sublane * sublane
    )

    # Default: one block if it fits, otherwise full-size blocks; the grid loop
    # is serial on 1-TC chips so we never split more than needed.
    tile_rows = rows if rows <= max_tile_rows else max_tile_rows

    # v7x (2 TCs) only: keep >=4 grid steps (>=2 per core) so both cores get
    # work and the software pipeline still overlaps DMA with compute.
    if _num_tensorcores() > 1 and rows >= 4 * sublane:
        steps = max(4, pl.cdiv(rows, tile_rows))
        if steps % 2:
            steps += 1
        aligned = pl.cdiv(pl.cdiv(rows, steps), sublane) * sublane
        tile_rows = min(tile_rows, aligned)

    grid = (pl.cdiv(rows, tile_rows),)

    out = pl.pallas_call(
        # NOTE: float(scale) assumes a Python-constant Lambda arg (as in the
        # PyTorch module); a traced scalar would need an SMEM operand instead.
        functools.partial(_lambda_kernel, scale=float(scale)),
        out_shape=jax.ShapeDtypeStruct((rows, _LANES), dtype),
        grid=grid,
        in_specs=[pl.BlockSpec((tile_rows, _LANES), lambda i: (i, 0))],
        out_specs=pl.BlockSpec((tile_rows, _LANES), lambda i: (i, 0)),
        compiler_params=pltpu.CompilerParams(
            dimension_semantics=("parallel",),
            vmem_limit_bytes=_VMEM_LIMIT_BYTES,
        ),
    )(x2d)

    out_flat = out.reshape(-1)
    if pad:
        out_flat = out_flat[:n]
    return out_flat.reshape(orig_shape)


if __name__ == "__main__":
    key = jax.random.PRNGKey(0)
    # Small NCHW input consistent with a conv-style feature map.
    x = jax.random.normal(key, (2, 4, 16, 16), dtype=jnp.float32)
    scale = 2.0  # the `*args` of Lambda

    y = pallas_lambda(x, scale)
    y = jax.block_until_ready(y)

    # Reference: fn(x, *args) = relu(x * scale)
    ref = jnp.maximum(x * scale, 0.0)
    assert y.shape == x.shape and y.dtype == x.dtype
    assert jnp.allclose(y, ref, atol=1e-6), "mismatch vs reference"

    print("KERNEL_OK")
</pallas_src>

<mosaic_0001>
module attributes {stable_mosaic.version = 11 : i64} {
  func.func @_lambda_kernel(%arg0: i32, %arg1: memref<16x128xf32, #tpu.memory_space<vmem>>, %arg2: memref<16x128xf32, #tpu.memory_space<vmem>>) attributes {dimension_semantics = [#tpu.dimension_semantics<parallel>], iteration_bounds = array<i64: 1>, scalar_prefetch = 0 : i64, scratch_operands = 0 : i64, tpu.core_type = #tpu.core_type<tc>, window_params = [{transform_indices = @transform_0, window_bounds = array<i64: 16, 128>}, {transform_indices = @transform_1, window_bounds = array<i64: 16, 128>}]} {
    %c0 = arith.constant 0 : index
    %c0_0 = arith.constant 0 : index
    %0 = vector.load %arg1[%c0, %c0_0] : memref<16x128xf32, #tpu.memory_space<vmem>>, vector<16x128xf32>
    %cst = arith.constant 2.000000e+00 : f32
    %1 = vector.broadcast %cst : f32 to vector<16x128xf32>
    %2 = arith.mulf %0, %1 : vector<16x128xf32>
    %cst_1 = arith.constant 0.000000e+00 : f32
    %3 = vector.broadcast %cst_1 : f32 to vector<16x128xf32>
    %4 = arith.maximumf %2, %3 : vector<16x128xf32>
    %c0_2 = arith.constant 0 : index
    %c0_3 = arith.constant 0 : index
    %5 = vector.load %arg2[%c0_2, %c0_3] : memref<16x128xf32, #tpu.memory_space<vmem>>, vector<16x128xf32>
    tpu.vector_store %arg2[%c0_2, %c0_3], %4 {strides = array<i32>} : memref<16x128xf32, #tpu.memory_space<vmem>>, vector<16x128xf32>,
    return
  }
  func.func @transform_0(%arg0: i32) -> (i32, i32) {
    %c0_i32 = arith.constant 0 : i32
    %c0_i32_0 = arith.constant 0 : i32
    return %arg0, %c0_i32 : i32, i32
  }
  func.func @transform_1(%arg0: i32) -> (i32, i32) {
    %c0_i32 = arith.constant 0 : i32
    %c0_i32_0 = arith.constant 0 : i32
    return %arg0, %c0_i32 : i32, i32
  }
}

</mosaic_0001>

<llo_original>
// kernel: tpu_custom_call.1
$region0: #{tpu_custom_call.1}
  #allocation0 [shape = 'u32[]', space=smem, size = 0x4, offset = 0x4, fixed_abs, tag = 'smem constant byte address 0x4 - core index']
  #allocation1 [shape = 'u32[72,128]{1,0:T(1,128)}', space=vmem, size = 0x9000, scoped, tag = 'internal scratch']
  %s0 = inlined_call_operand.hbm [shape: f32[16,128], index: 0, kind: input, shape index: {}]
  %s1 = inlined_call_operand.hbm [shape: f32[16,128], index: 1, kind: output, shape index: {}]
  %s2 = sld [smem:[#allocation0]]
  $region18: #{tpu_custom_call.1} parent=0
    _
  %s4 = ssub.s32 1, %s2
  %s5 = scalar_select 0, %s4, %s2
  $region1: #{tpu_custom_call.1} parent=0
    #allocation2 [shape = 'u8[8192]{0}', space=vmem, size = 0x2000, scoped, tag = 'input window, operand 0, single buffered']
    #allocation3 [shape = 's32[1]{0}', space=sflag, size = 0x4, scoped, tag = 'scoped memory for tpu_custom_call.1']
    #allocation4 [shape = 's32[1]{0}', space=sflag, size = 0x4, scoped, tag = 'scoped memory for tpu_custom_call.1']
    #allocation5 [shape = 'u8[8192]{0}', space=vmem, size = 0x2000, scoped, tag = 'output window, operand 0, single buffered']
    %6 = vsyncpa [#allocation3], 0
    %7 = vsyncpa [#allocation4], 0
    // Predicated region
    $region2: #{tpu_custom_call.1} parent=1 // pred_check
      _
    $region3: #{tpu_custom_call.1} parent=1 // pred_check_branch
      %9 = sbr.rel (0) target = $region5
    $region4: #{tpu_custom_call.1} parent=1 // pred_region
      %11 = vsyncadd [#allocation3], 0
      %s12 = sshll.u32 %s0, 4
      %s13 = int_to_ptr.hbm [resolvable:$true] %s12
      %s14 = sshll.u32 [#allocation2], 4
      %s15 = int_to_ptr.vmem [resolvable:$true] %s14
      %20 = dma.hbm_to_vmem [thread:$0]  %s13, 256, %s15, [#allocation3], 128, 128, 8
    $region5: #{tpu_custom_call.1} parent=1 // pred_fallthru
      _
    // Predicated region
    $region6: #{tpu_custom_call.1} parent=1 // pred_check
      _
    $region7: #{tpu_custom_call.1} parent=1 // pred_check_branch
      %22 = sbr.rel (0) target = $region9
    $region8: #{tpu_custom_call.1} parent=1 // pred_region
      %24 = dma.done [#allocation3], 256
    $region9: #{tpu_custom_call.1} parent=1 // pred_fallthru
      _
    %v25 = vld [vmem:[#allocation2] sm:$0xff]
    %v26 = vld [vmem:[#allocation2 + $0x8] sm:$0xff]
    %v27 = vmul.f32 %v25, 2.0
    %v28 = vmul.f32 %v26, 2.0
    %v29 = vmax.f32 %v27, 0.0
    %v30 = vmax.f32 %v28, 0.0
    %31 = vst [vmem:[#allocation5] sm:$0xff] %v29
    %32 = vst [vmem:[#allocation5 + $0x8] sm:$0xff] %v30
    // Predicated region
    $region10: #{tpu_custom_call.1} parent=1 // pred_check
      _
    $region11: #{tpu_custom_call.1} parent=1 // pred_check_branch
      %34 = sbr.rel (0) target = $region13
    $region12: #{tpu_custom_call.1} parent=1 // pred_region
      %36 = vsyncadd [#allocation4], 0
      %s37 = sshll.u32 [#allocation5], 4
      %s38 = int_to_ptr.vmem [resolvable:$true] %s37
      %s39 = sshll.u32 %s1, 4
      %s40 = int_to_ptr.hbm [resolvable:$true] %s39
      %45 = dma.vmem_to_hbm [thread:$0]  %s38, 256, %s40, [#allocation4], 128, 128, 8
    $region13: #{tpu_custom_call.1} parent=1 // pred_fallthru
      _
    // Predicated region
    $region14: #{tpu_custom_call.1} parent=1 // pred_check
      _
    $region15: #{tpu_custom_call.1} parent=1 // pred_check_branch
      %47 = sbr.rel (0) target = $region17
    $region16: #{tpu_custom_call.1} parent=1 // pred_region
      %49 = dma.done [#allocation4], 256
    $region17: #{tpu_custom_call.1} parent=1 // pred_fallthru
      _
    %50 = vsyncpa [#allocation3], 1
    %51 = vsyncpa [#allocation4], 1

</llo_original>
